<compile_context>
chip_gen: v6e
topology: v6e:2x2x1
jax: 0.10.0
libtpu: 0.0.40
codegen_flags: <defaults>
</compile_context>

<pallas_src>
import functools

import jax
import jax.numpy as jnp
from jax.experimental import pallas as pl
from jax.experimental.pallas import tpu as pltpu

NEG_SLOPE = 0.01
BN_EPS = 1e-5


def _round_up(x, m):
    return ((x + m - 1) // m) * m


def _leaky_relu(x):
    # mul + max (cheaper than cmp + select); exact for slope in (0, 1).
    return jnp.maximum(x, NEG_SLOPE * x)


def mlp_kernel(
    x_ref,
    w1_ref, c1_ref,
    w2_ref, c2_ref,
    w3_ref, c3_ref,
    w4_ref, c4_ref,
    o_ref,
):
    # Layer 1: Linear + folded BN + LeakyReLU (+ Dropout = identity in eval)
    h = jnp.dot(x_ref[...], w1_ref[...], preferred_element_type=jnp.float32)
    h = _leaky_relu(h + c1_ref[...]).astype(w2_ref.dtype)

    # Layer 2
    h = jnp.dot(h, w2_ref[...], preferred_element_type=jnp.float32)
    h = _leaky_relu(h + c2_ref[...]).astype(w3_ref.dtype)

    # Layer 3
    h = jnp.dot(h, w3_ref[...], preferred_element_type=jnp.float32)
    h = _leaky_relu(h + c3_ref[...]).astype(w4_ref.dtype)

    # Layer 4: Linear only (output padded to a 128-wide lane-dense block)
    out = jnp.dot(h, w4_ref[...], preferred_element_type=jnp.float32)
    o_ref[...] = (out + c4_ref[...]).astype(o_ref.dtype)


@functools.partial(jax.jit, static_argnames=("batch_tile", "num_classes"))
def mlp_forward(x, fp, *, num_classes, batch_tile=256):
    """fp: folded params dict with w1..w4 (compute dtype), c1..c4 (f32)."""
    B, d_in = x.shape
    compute_dtype = fp["w1"].dtype
    n_out_pad = fp["w4"].shape[1]  # already padded to a multiple of 128

    # Effective batch tile: big for throughput, but never pad a tiny batch up
    # to hundreds of wasted rows. Keep it a multiple of 8 (sublane).
    tile = min(batch_tile, _round_up(B, 8))
    b_pad = _round_up(B, tile)

    xc = x.astype(compute_dtype)
    if b_pad != B:
        xc = jnp.pad(xc, ((0, b_pad - B), (0, 0)))

    ordered = [
        fp["w1"], fp["c1"],
        fp["w2"], fp["c2"],
        fp["w3"], fp["c3"],
        fp["w4"], fp["c4"],
    ]

    in_specs = [pl.BlockSpec((tile, d_in), lambda i: (i, 0))]
    # Weights/shifts: whole array as one block, constant index map -> stays
    # resident in VMEM across all grid steps (~0.4 MiB bf16 total).
    in_specs += [pl.BlockSpec(a.shape, lambda i: (0, 0)) for a in ordered]

    out_spec = pl.BlockSpec((tile, n_out_pad), lambda i: (i, 0))

    out = pl.pallas_call(
        mlp_kernel,
        out_shape=jax.ShapeDtypeStruct((b_pad, n_out_pad), jnp.float32),
        grid=(b_pad // tile,),
        in_specs=in_specs,
        out_specs=out_spec,
        compiler_params=pltpu.CompilerParams(
            dimension_semantics=("parallel",),  # batch tiles shard across TCs
        ),
    )(xc, *ordered)

    return out[:B, :num_classes]


def fold_params(params, compute_dtype=jnp.bfloat16):
    """Fold Linear bias + BN scale/shift into the weights (eval semantics)."""
    fp = {}
    for li in range(1, 4):
        w = params[f"w{li}"]
        b = params[f"b{li}"]
        s = params[f"s{li}"]
        t = params[f"t{li}"]
        fp[f"w{li}"] = (w * s).astype(compute_dtype)          # column-wise
        fp[f"c{li}"] = (b * s + t).astype(jnp.float32)
    # Final layer: zero-pad output width to a multiple of 128 lanes.
    w4 = params["w4"]
    b4 = params["b4"]
    n = w4.shape[1]
    n_pad = _round_up(n, 128)
    fp["w4"] = jnp.pad(w4, ((0, 0), (0, n_pad - n))).astype(compute_dtype)
    fp["c4"] = jnp.pad(b4, ((0, 0), (0, n_pad - n))).astype(jnp.float32)
    return fp


def init_params(key, input_size, num_classes):
    dims = [(input_size, 512), (512, 256), (256, 128), (128, num_classes)]
    params = {}
    keys = jax.random.split(key, 16)
    ki = 0
    for li, (din, dout) in enumerate(dims, start=1):
        bound = 1.0 / jnp.sqrt(din)
        params[f"w{li}"] = jax.random.uniform(
            keys[ki], (din, dout), jnp.float32, -bound, bound); ki += 1
        params[f"b{li}"] = jax.random.uniform(
            keys[ki], (1, dout), jnp.float32, -bound, bound); ki += 1
        if li <= 3:
            gamma = 1.0 + 0.1 * jax.random.normal(keys[ki], (1, dout)); ki += 1
            beta = 0.1 * jax.random.normal(keys[ki], (1, dout)); ki += 1
            running_mean = jnp.zeros((1, dout), jnp.float32)
            running_var = jnp.ones((1, dout), jnp.float32)
            scale = gamma / jnp.sqrt(running_var + BN_EPS)
            shift = beta - running_mean * scale
            params[f"s{li}"] = scale.astype(jnp.float32)
            params[f"t{li}"] = shift.astype(jnp.float32)
    return params


def reference_folded(x, fp, num_classes):
    """Pure-JAX reference using the exact same folded/cast params."""
    cd = fp["w1"].dtype
    h = x.astype(cd)
    for li in range(1, 4):
        h = jnp.dot(h, fp[f"w{li}"], preferred_element_type=jnp.float32)
        h = _leaky_relu(h + fp[f"c{li}"]).astype(cd)
    out = jnp.dot(h, fp["w4"], preferred_element_type=jnp.float32) + fp["c4"]
    return out[:, :num_classes]


def reference_f32(x, params):
    """Unfolded f32 reference matching the PyTorch eval forward."""
    h = x
    for li in range(1, 4):
        h = h @ params[f"w{li}"] + params[f"b{li}"]
        h = h * params[f"s{li}"] + params[f"t{li}"]
        h = jnp.where(h > 0, h, NEG_SLOPE * h)
    return h @ params["w4"] + params["b4"]


if __name__ == "__main__":
    key = jax.random.PRNGKey(0)
    k_x, k_p = jax.random.split(key)

    batch, input_size, num_classes = 16, 64, 10
    x = jax.random.normal(k_x, (batch, input_size), jnp.float32)
    params = init_params(k_p, input_size, num_classes)
    fp = fold_params(params, compute_dtype=jnp.bfloat16)

    out = mlp_forward(x, fp, num_classes=num_classes, batch_tile=256)
    out = jax.block_until_ready(out)
    assert out.shape == (batch, num_classes)

    # Tight check against a reference using identical folded/bf16 params.
    ref = reference_folded(x, fp, num_classes)
    assert jnp.allclose(out, ref, atol=5e-3, rtol=5e-3), (
        float(jnp.max(jnp.abs(out - ref))))

    # Loose sanity check against the full-f32 unfolded (PyTorch-eval) math;
    # deviation here is only bf16 weight/activation quantization.
    ref32 = reference_f32(x, params)
    assert float(jnp.max(jnp.abs(out - ref32))) < 0.25

    print("KERNEL_OK")
</pallas_src>

<mosaic_0001>
module attributes {stable_mosaic.version = 11 : i64} {
  func.func @mlp_kernel(%arg0: i32, %arg1: memref<16x64xbf16, #tpu.memory_space<vmem>>, %arg2: memref<64x512xbf16, #tpu.memory_space<vmem>>, %arg3: memref<1x512xf32, #tpu.memory_space<vmem>>, %arg4: memref<512x256xbf16, #tpu.memory_space<vmem>>, %arg5: memref<1x256xf32, #tpu.memory_space<vmem>>, %arg6: memref<256x128xbf16, #tpu.memory_space<vmem>>, %arg7: memref<1x128xf32, #tpu.memory_space<vmem>>, %arg8: memref<128x128xbf16, #tpu.memory_space<vmem>>, %arg9: memref<1x128xf32, #tpu.memory_space<vmem>>, %arg10: memref<16x128xf32, #tpu.memory_space<vmem>>) attributes {dimension_semantics = [#tpu.dimension_semantics<parallel>], iteration_bounds = array<i64: 1>, scalar_prefetch = 0 : i64, scratch_operands = 0 : i64, tpu.core_type = #tpu.core_type<tc>, window_params = [{transform_indices = @transform_0, window_bounds = array<i64: 16, 64>}, {pipeline_mode = #tpu.pipeline_mode<synchronous>, transform_indices = @transform_1, window_bounds = array<i64: 64, 512>}, {pipeline_mode = #tpu.pipeline_mode<synchronous>, transform_indices = @transform_2, window_bounds = array<i64: 1, 512>}, {pipeline_mode = #tpu.pipeline_mode<synchronous>, transform_indices = @transform_3, window_bounds = array<i64: 512, 256>}, {pipeline_mode = #tpu.pipeline_mode<synchronous>, transform_indices = @transform_4, window_bounds = array<i64: 1, 256>}, {pipeline_mode = #tpu.pipeline_mode<synchronous>, transform_indices = @transform_5, window_bounds = array<i64: 256, 128>}, {pipeline_mode = #tpu.pipeline_mode<synchronous>, transform_indices = @transform_6, window_bounds = array<i64: 1, 128>}, {pipeline_mode = #tpu.pipeline_mode<synchronous>, transform_indices = @transform_7, window_bounds = array<i64: 128, 128>}, {pipeline_mode = #tpu.pipeline_mode<synchronous>, transform_indices = @transform_8, window_bounds = array<i64: 1, 128>}, {transform_indices = @transform_9, window_bounds = array<i64: 16, 128>}]} {
    %c0 = arith.constant 0 : index
    %c0_0 = arith.constant 0 : index
    %0 = vector.load %arg1[%c0, %c0_0] : memref<16x64xbf16, #tpu.memory_space<vmem>>, vector<16x64xbf16>
    %c0_1 = arith.constant 0 : index
    %c0_2 = arith.constant 0 : index
    %1 = vector.load %arg2[%c0_1, %c0_2] : memref<64x512xbf16, #tpu.memory_space<vmem>>, vector<64x512xbf16>
    %cst = arith.constant dense<0.000000e+00> : vector<16x512xf32>
    %2 = tpu.matmul %0, %1, %cst {dimension_numbers = #tpu.dot_dimension_numbers<[1], [0], [0], [1], [0, 0, 1, 1], [], []>} : vector<16x64xbf16>, vector<64x512xbf16>, vector<16x512xf32> -> vector<16x512xf32>
    %c0_3 = arith.constant 0 : index
    %c0_4 = arith.constant 0 : index
    %3 = vector.load %arg3[%c0_3, %c0_4] : memref<1x512xf32, #tpu.memory_space<vmem>>, vector<1x512xf32>
    %4 = vector.broadcast %3 : vector<1x512xf32> to vector<16x512xf32>
    %5 = arith.addf %2, %4 : vector<16x512xf32>
    %cst_5 = arith.constant 0.00999999977 : f32
    %6 = vector.broadcast %cst_5 : f32 to vector<16x512xf32>
    %7 = arith.mulf %6, %5 : vector<16x512xf32>
    %8 = arith.maximumf %5, %7 : vector<16x512xf32>
    %9 = arith.truncf %8 : vector<16x512xf32> to vector<16x512xbf16>
    %c0_6 = arith.constant 0 : index
    %c0_7 = arith.constant 0 : index
    %10 = vector.load %arg4[%c0_6, %c0_7] : memref<512x256xbf16, #tpu.memory_space<vmem>>, vector<512x256xbf16>
    %cst_8 = arith.constant dense<0.000000e+00> : vector<16x256xf32>
    %11 = tpu.matmul %9, %10, %cst_8 {dimension_numbers = #tpu.dot_dimension_numbers<[1], [0], [0], [1], [0, 0, 1, 1], [], []>} : vector<16x512xbf16>, vector<512x256xbf16>, vector<16x256xf32> -> vector<16x256xf32>
    %c0_9 = arith.constant 0 : index
    %c0_10 = arith.constant 0 : index
    %12 = vector.load %arg5[%c0_9, %c0_10] : memref<1x256xf32, #tpu.memory_space<vmem>>, vector<1x256xf32>
    %13 = vector.broadcast %12 : vector<1x256xf32> to vector<16x256xf32>
    %14 = arith.addf %11, %13 : vector<16x256xf32>
    %cst_11 = arith.constant 0.00999999977 : f32
    %15 = vector.broadcast %cst_11 : f32 to vector<16x256xf32>
    %16 = arith.mulf %15, %14 : vector<16x256xf32>
    %17 = arith.maximumf %14, %16 : vector<16x256xf32>
    %18 = arith.truncf %17 : vector<16x256xf32> to vector<16x256xbf16>
    %c0_12 = arith.constant 0 : index
    %c0_13 = arith.constant 0 : index
    %19 = vector.load %arg6[%c0_12, %c0_13] : memref<256x128xbf16, #tpu.memory_space<vmem>>, vector<256x128xbf16>
    %cst_14 = arith.constant dense<0.000000e+00> : vector<16x128xf32>
    %20 = tpu.matmul %18, %19, %cst_14 {dimension_numbers = #tpu.dot_dimension_numbers<[1], [0], [0], [1], [0, 0, 1, 1], [], []>} : vector<16x256xbf16>, vector<256x128xbf16>, vector<16x128xf32> -> vector<16x128xf32>
    %c0_15 = arith.constant 0 : index
    %c0_16 = arith.constant 0 : index
    %21 = vector.load %arg7[%c0_15, %c0_16] : memref<1x128xf32, #tpu.memory_space<vmem>>, vector<1x128xf32>
    %22 = vector.broadcast %21 : vector<1x128xf32> to vector<16x128xf32>
    %23 = arith.addf %20, %22 : vector<16x128xf32>
    %cst_17 = arith.constant 0.00999999977 : f32
    %24 = vector.broadcast %cst_17 : f32 to vector<16x128xf32>
    %25 = arith.mulf %24, %23 : vector<16x128xf32>
    %26 = arith.maximumf %23, %25 : vector<16x128xf32>
    %27 = arith.truncf %26 : vector<16x128xf32> to vector<16x128xbf16>
    %c0_18 = arith.constant 0 : index
    %c0_19 = arith.constant 0 : index
    %28 = vector.load %arg8[%c0_18, %c0_19] : memref<128x128xbf16, #tpu.memory_space<vmem>>, vector<128x128xbf16>
    %cst_20 = arith.constant dense<0.000000e+00> : vector<16x128xf32>
    %29 = tpu.matmul %27, %28, %cst_20 {dimension_numbers = #tpu.dot_dimension_numbers<[1], [0], [0], [1], [0, 0, 1, 1], [], []>} : vector<16x128xbf16>, vector<128x128xbf16>, vector<16x128xf32> -> vector<16x128xf32>
    %c0_21 = arith.constant 0 : index
    %c0_22 = arith.constant 0 : index
    %30 = vector.load %arg9[%c0_21, %c0_22] : memref<1x128xf32, #tpu.memory_space<vmem>>, vector<1x128xf32>
    %31 = vector.broadcast %30 : vector<1x128xf32> to vector<16x128xf32>
    %32 = arith.addf %29, %31 : vector<16x128xf32>
    %c0_23 = arith.constant 0 : index
    %c0_24 = arith.constant 0 : index
    %33 = vector.load %arg10[%c0_23, %c0_24] : memref<16x128xf32, #tpu.memory_space<vmem>>, vector<16x128xf32>
    tpu.vector_store %arg10[%c0_23, %c0_24], %32 {strides = array<i32>} : memref<16x128xf32, #tpu.memory_space<vmem>>, vector<16x128xf32>,
    return
  }
  func.func @transform_0(%arg0: i32) -> (i32, i32) {
    %c0_i32 = arith.constant 0 : i32
    %c0_i32_0 = arith.constant 0 : i32
    return %arg0, %c0_i32 : i32, i32
  }
  func.func @transform_1(%arg0: i32) -> (i32, i32) {
    %c0_i32 = arith.constant 0 : i32
    %c0_i32_0 = arith.constant 0 : i32
    %c0_i32_1 = arith.constant 0 : i32
    return %c0_i32, %c0_i32_0 : i32, i32
  }
  func.func @transform_2(%arg0: i32) -> (i32, i32) {
    %c0_i32 = arith.constant 0 : i32
    %c0_i32_0 = arith.constant 0 : i32
    %c0_i32_1 = arith.constant 0 : i32
    return %c0_i32, %c0_i32_0 : i32, i32
  }
  func.func @transform_3(%arg0: i32) -> (i32, i32) {
    %c0_i32 = arith.constant 0 : i32
    %c0_i32_0 = arith.constant 0 : i32
    %c0_i32_1 = arith.constant 0 : i32
    return %c0_i32, %c0_i32_0 : i32, i32
  }
  func.func @transform_4(%arg0: i32) -> (i32, i32) {
    %c0_i32 = arith.constant 0 : i32
    %c0_i32_0 = arith.constant 0 : i32
    %c0_i32_1 = arith.constant 0 : i32
    return %c0_i32, %c0_i32_0 : i32, i32
  }
  func.func @transform_5(%arg0: i32) -> (i32, i32) {
    %c0_i32 = arith.constant 0 : i32
    %c0_i32_0 = arith.constant 0 : i32
    %c0_i32_1 = arith.constant 0 : i32
    return %c0_i32, %c0_i32_0 : i32, i32
  }
  func.func @transform_6(%arg0: i32) -> (i32, i32) {
    %c0_i32 = arith.constant 0 : i32
    %c0_i32_0 = arith.constant 0 : i32
    %c0_i32_1 = arith.constant 0 : i32
    return %c0_i32, %c0_i32_0 : i32, i32
  }
  func.func @transform_7(%arg0: i32) -> (i32, i32) {
    %c0_i32 = arith.constant 0 : i32
    %c0_i32_0 = arith.constant 0 : i32
    %c0_i32_1 = arith.constant 0 : i32
    return %c0_i32, %c0_i32_0 : i32, i32
  }
  func.func @transform_8(%arg0: i32) -> (i32, i32) {
    %c0_i32 = arith.constant 0 : i32
    %c0_i32_0 = arith.constant 0 : i32
    %c0_i32_1 = arith.constant 0 : i32
    return %c0_i32, %c0_i32_0 : i32, i32
  }
  func.func @transform_9(%arg0: i32) -> (i32, i32) {
    %c0_i32 = arith.constant 0 : i32
    %c0_i32_0 = arith.constant 0 : i32
    return %arg0, %c0_i32 : i32, i32
  }
}

</mosaic_0001>

<llo_original>
// kernel: mlp_forward.1
$region0: #{mlp_forward.1}
  #allocation0 [shape = 'u32[]', space=smem, size = 0x4, offset = 0x4, fixed_abs, tag = 'smem constant byte address 0x4 - core index']
  #allocation1 [shape = 'u32[144,128]{1,0:T(1,128)}', space=vmem, size = 0x12000, scoped, tag = 'internal scratch']
  %s0 = inlined_call_operand.vmem [shape: bf16[16,64], index: 0, kind: input, shape index: {}]
  %s1 = inlined_call_operand.hbm [shape: bf16[64,512], index: 1, kind: input, shape index: {}]
  %s2 = inlined_call_operand.vmem [shape: f32[1,512], index: 2, kind: input, shape index: {}]
  %s3 = inlined_call_operand.hbm [shape: bf16[512,256], index: 3, kind: input, shape index: {}]
  %s4 = inlined_call_operand.vmem [shape: f32[1,256], index: 4, kind: input, shape index: {}]
  %s5 = inlined_call_operand.hbm [shape: bf16[256,128], index: 5, kind: input, shape index: {}]
  %s6 = inlined_call_operand.vmem [shape: f32[1,128], index: 6, kind: input, shape index: {}]
  %s7 = inlined_call_operand.hbm [shape: bf16[128,128], index: 7, kind: input, shape index: {}]
  %s8 = inlined_call_operand.vmem [shape: f32[1,128], index: 8, kind: input, shape index: {}]
  %s9 = inlined_call_operand.hbm [shape: f32[16,128], index: 9, kind: output, shape index: {}]
  %s10 = sld [smem:[#allocation0]]
  $region62: #{mlp_forward.1} parent=0
    _
  %s12 = ssub.s32 1, %s10
  %s13 = scalar_select 0, %s12, %s10
  $region1: #{mlp_forward.1} parent=0
    #allocation2 [shape = 'u8[65536]{0}', space=vmem, size = 0x10000, scoped, tag = 'input window, operand 1, single buffered']
    #allocation3 [shape = 's32[1]{0}', space=sflag, size = 0x4, scoped, tag = 'scoped memory for mlp_forward.1']
    #allocation4 [shape = 's32[1]{0}', space=sflag, size = 0x4, scoped, tag = 'scoped memory for mlp_forward.1']
    #allocation5 [shape = 'u8[262144]{0}', space=vmem, size = 0x40000, scoped, tag = 'input window, operand 3, single buffered']
    #allocation6 [shape = 's32[1]{0}', space=sflag, size = 0x4, scoped, tag = 'scoped memory for mlp_forward.1']
    #allocation7 [shape = 'u8[65536]{0}', space=vmem, size = 0x10000, scoped, tag = 'input window, operand 5, single buffered']
    #allocation8 [shape = 'u8[32768]{0}', space=vmem, size = 0x8000, scoped, tag = 'input window, operand 7, single buffered']
    #allocation9 [shape = 's32[1]{0}', space=sflag, size = 0x4, scoped, tag = 'scoped memory for mlp_forward.1']
    #allocation10 [shape = 'u8[8192]{0}', space=vmem, size = 0x2000, scoped, tag = 'output window, operand 0, single buffered']
    %14 = vsyncpa [#allocation3], 0
    %15 = vsyncpa [#allocation6], 0
    %16 = vsyncpa [#allocation9], 0
    %17 = vsyncpa [#allocation4], 0
    // Predicated region
    $region2: #{mlp_forward.1} parent=1 // pred_check
      _
    $region3: #{mlp_forward.1} parent=1 // pred_check_branch
      %19 = sbr.rel (0) target = $region5
    $region4: #{mlp_forward.1} parent=1 // pred_region
      _
    $region5: #{mlp_forward.1} parent=1 // pred_fallthru
      _
    // Predicated region
    $region6: #{mlp_forward.1} parent=1 // pred_check
      _
    $region7: #{mlp_forward.1} parent=1 // pred_check_branch
      %21 = sbr.rel (0) target = $region9
    $region8: #{mlp_forward.1} parent=1 // pred_region
      %s23 = ssub.s32 2048, 2048
      %24 = vsyncadd [#allocation3], %s23
      %s25 = sshll.u32 [#allocation2], 4
      %s26 = int_to_ptr.vmem [resolvable:$true] %s25
      %31 = dma.hbm_to_vmem [thread:$0]  %s1, 2048, %s26, [#allocation3], 256, 256, 16
    $region9: #{mlp_forward.1} parent=1 // pred_fallthru
      _
    // Predicated region
    $region10: #{mlp_forward.1} parent=1 // pred_check
      _
    $region11: #{mlp_forward.1} parent=1 // pred_check_branch
      %33 = sbr.rel (0) target = $region13
    $region12: #{mlp_forward.1} parent=1 // pred_region
      _
    $region13: #{mlp_forward.1} parent=1 // pred_fallthru
      _
    // Predicated region
    $region14: #{mlp_forward.1} parent=1 // pred_check
      _
    $region15: #{mlp_forward.1} parent=1 // pred_check_branch
      %35 = sbr.rel (0) target = $region17
    $region16: #{mlp_forward.1} parent=1 // pred_region
      %s37 = ssub.s32 8192, 8192
      %38 = vsyncadd [#allocation6], %s37
      %s39 = sshll.u32 [#allocation5], 4
      %s40 = int_to_ptr.vmem [resolvable:$true] %s39
      %45 = dma.hbm_to_vmem [thread:$0]  %s3, 8192, %s40, [#allocation6], 128, 128, 8
    $region17: #{mlp_forward.1} parent=1 // pred_fallthru
      _
    // Predicated region
    $region18: #{mlp_forward.1} parent=1 // pred_check
      _
    $region19: #{mlp_forward.1} parent=1 // pred_check_branch
      %47 = sbr.rel (0) target = $region21
    $region20: #{mlp_forward.1} parent=1 // pred_region
      _
    $region21: #{mlp_forward.1} parent=1 // pred_fallthru
      _
    // Predicated region
    $region22: #{mlp_forward.1} parent=1 // pred_check
      _
    $region23: #{mlp_forward.1} parent=1 // pred_check_branch
      %49 = sbr.rel (0) target = $region25
    $region24: #{mlp_forward.1} parent=1 // pred_region
      %s51 = ssub.s32 2048, 2048
      %52 = vsyncadd [#allocation6], %s51
      %s53 = sshll.u32 [#allocation7], 4
      %s54 = int_to_ptr.vmem [resolvable:$true] %s53
      %59 = dma.hbm_to_vmem [thread:$0]  %s5, 2048, %s54, [#allocation6], 64, 64, 4
    $region25: #{mlp_forward.1} parent=1 // pred_fallthru
      _
    // Predicated region
    $region26: #{mlp_forward.1} parent=1 // pred_check
      _
    $region27: #{mlp_forward.1} parent=1 // pred_check_branch
      %61 = sbr.rel (0) target = $region29
    $region28: #{mlp_forward.1} parent=1 // pred_region
      _
    $region29: #{mlp_forward.1} parent=1 // pred_fallthru
      _
    // Predicated region
    $region30: #{mlp_forward.1} parent=1 // pred_check
      _
    $region31: #{mlp_forward.1} parent=1 // pred_check_branch
      %63 = sbr.rel (0) target = $region33
    $region32: #{mlp_forward.1} parent=1 // pred_region
      %s65 = ssub.s32 1024, 1024
      %66 = vsyncadd [#allocation9], %s65
      %s67 = sshll.u32 [#allocation8], 4
      %s68 = int_to_ptr.vmem [resolvable:$true] %s67
      %73 = dma.hbm_to_vmem [thread:$0]  %s7, 1024, %s68, [#allocation9], 64, 64, 4
    $region33: #{mlp_forward.1} parent=1 // pred_fallthru
      _
    // Predicated region
    $region34: #{mlp_forward.1} parent=1 // pred_check
      _
    $region35: #{mlp_forward.1} parent=1 // pred_check_branch
      %75 = sbr.rel (0) target = $region37
    $region36: #{mlp_forward.1} parent=1 // pred_region
      _
    $region37: #{mlp_forward.1} parent=1 // pred_fallthru
      _
    // Predicated region
    $region38: #{mlp_forward.1} parent=1 // pred_check
      _
    $region39: #{mlp_forward.1} parent=1 // pred_check_branch
      %77 = sbr.rel (0) target = $region41
    $region40: #{mlp_forward.1} parent=1 // pred_region
      %78 = dma.done [#allocation3], 2048
    $region41: #{mlp_forward.1} parent=1 // pred_fallthru
      _
    // Predicated region
    $region42: #{mlp_forward.1} parent=1 // pred_check
      _
    $region43: #{mlp_forward.1} parent=1 // pred_check_branch
      %80 = sbr.rel (0) target = $region45
    $region44: #{mlp_forward.1} parent=1 // pred_region
      %81 = dma.done [#allocation6], 8192
    $region45: #{mlp_forward.1} parent=1 // pred_fallthru
      _
    // Predicated region
    $region46: #{mlp_forward.1} parent=1 // pred_check
      _
    $region47: #{mlp_forward.1} parent=1 // pred_check_branch
      %83 = sbr.rel (0) target = $region49
    $region48: #{mlp_forward.1} parent=1 // pred_region
      %84 = dma.done [#allocation6], 2048
    $region49: #{mlp_forward.1} parent=1 // pred_fallthru
      _
    // Predicated region
    $region50: #{mlp_forward.1} parent=1 // pred_check
      _
    $region51: #{mlp_forward.1} parent=1 // pred_check_branch
      %86 = sbr.rel (0) target = $region53
    $region52: #{mlp_forward.1} parent=1 // pred_region
      %87 = dma.done [#allocation9], 1024
    $region53: #{mlp_forward.1} parent=1 // pred_fallthru
      _
    %v89 = vld [vmem:[%s0] sm:$0xf]
    %v90 = vld [vmem:[%s0 + $0x4] sm:$0xf]
    %v91 = vld [vmem:[#allocation2] sm:$0xff]
    %v92 = vld [vmem:[#allocation2 + $0x8] sm:$0xff]
    %v93 = vld [vmem:[#allocation2 + $0x10] sm:$0xff]
    %v94 = vld [vmem:[#allocation2 + $0x18] sm:$0xff]
    %v95 = vld [vmem:[#allocation2 + $0x20] sm:$0xff]
    %v96 = vld [vmem:[#allocation2 + $0x28] sm:$0xff]
    %v97 = vld [vmem:[#allocation2 + $0x30] sm:$0xff]
    %v98 = vld [vmem:[#allocation2 + $0x38] sm:$0xff]
    %v99 = vld [vmem:[#allocation2 + $0x40] sm:$0xff]
    %v100 = vld [vmem:[#allocation2 + $0x48] sm:$0xff]
    %v101 = vld [vmem:[#allocation2 + $0x50] sm:$0xff]
    %v102 = vld [vmem:[#allocation2 + $0x58] sm:$0xff]
    %v103 = vld [vmem:[#allocation2 + $0x60] sm:$0xff]
    %v104 = vld [vmem:[#allocation2 + $0x68] sm:$0xff]
    %v105 = vld [vmem:[#allocation2 + $0x70] sm:$0xff]
    %v106 = vld [vmem:[#allocation2 + $0x78] sm:$0xff]
    %v107 = vld [vmem:[%s2] sm:$0xf]
    %v109 = vlaneseq
    %v110 = vshrl.u32 %v109, 7
    %v111 = vsub.s32 0, %v110
    %v112 = vrot.slane %v107, %v111
    %v113 = vlaneseq
    %v114 = vshrl.u32 %v113, 7
    %v115 = vsub.s32 1, %v114
    %v116 = vrot.slane %v107, %v115
    %v117 = vlaneseq
    %v118 = vshrl.u32 %v117, 7
    %v119 = vsub.s32 2, %v118
    %v120 = vrot.slane %v107, %v119
    %v121 = vlaneseq
    %v122 = vshrl.u32 %v121, 7
    %v123 = vsub.s32 3, %v122
    %v124 = vrot.slane %v107, %v123
    %v131 = vunpack.c.l.b16 %v89
    %v132 = vunpack.c.l.b16 %v90
    %v133 = vpack.c.b16 %v132, %v131
    %v150 = vunpack.c.l.b16 %v91
    %v151 = vunpack.c.h.b16 %v91
    %v152 = vunpack.c.l.b16 %v92
    %v153 = vunpack.c.h.b16 %v92
    %v154 = vunpack.c.l.b16 %v93
    %v155 = vunpack.c.h.b16 %v93
    %v156 = vunpack.c.l.b16 %v94
    %v157 = vunpack.c.h.b16 %v94
    %v158 = vunpack.c.l.b16 %v95
    %v159 = vunpack.c.h.b16 %v95
    %v160 = vunpack.c.l.b16 %v96
    %v161 = vunpack.c.h.b16 %v96
    %v162 = vunpack.c.l.b16 %v97
    %v163 = vunpack.c.h.b16 %v97
    %v164 = vunpack.c.l.b16 %v98
    %v165 = vunpack.c.h.b16 %v98
    %v166 = vunpack.c.l.b16 %v99
    %v167 = vunpack.c.h.b16 %v99
    %v168 = vunpack.c.l.b16 %v100
    %v169 = vunpack.c.h.b16 %v100
    %v170 = vunpack.c.l.b16 %v101
    %v171 = vunpack.c.h.b16 %v101
    %v172 = vunpack.c.l.b16 %v102
    %v173 = vunpack.c.h.b16 %v102
    %v174 = vunpack.c.l.b16 %v103
    %v175 = vunpack.c.h.b16 %v103
    %v176 = vunpack.c.l.b16 %v104
    %v177 = vunpack.c.h.b16 %v104
    %v178 = vunpack.c.l.b16 %v105
    %v179 = vunpack.c.h.b16 %v105
    %v180 = vunpack.c.l.b16 %v106
    %v181 = vunpack.c.h.b16 %v106
    %v182 = vpack.c.b16 %v154, %v150
    %v183 = vpack.c.b16 %v155, %v151
    %v184 = vpack.c.b16 %v156, %v152
    %v185 = vpack.c.b16 %v157, %v153
    %v186 = vpack.c.b16 %v162, %v158
    %v187 = vpack.c.b16 %v163, %v159
    %v188 = vpack.c.b16 %v164, %v160
    %v189 = vpack.c.b16 %v165, %v161
    %v190 = vpack.c.b16 %v170, %v166
    %v191 = vpack.c.b16 %v171, %v167
    %v192 = vpack.c.b16 %v172, %v168
    %v193 = vpack.c.b16 %v173, %v169
    %v194 = vpack.c.b16 %v178, %v174
    %v195 = vpack.c.b16 %v179, %v175
    %v196 = vpack.c.b16 %v180, %v176
    %v197 = vpack.c.b16 %v181, %v177
    %vm214 = vcmask 523264
    %v216 = vsel %vm214, %v133, 0
    %218 = vmatprep.subr.bf16.mxu0 0
    %219 = vmatpush1.bf16.msra.mxu0 0
    %220 = vmatprep.subr.bf16.mxu0 0
    %221 = vmatpush1.bf16.msra.mxu0 0
    %222 = vmatprep.subr.bf16.mxu0 0
    %223 = vmatpush1.bf16.msra.mxu0 0
    %224 = vmatprep.subr.bf16.mxu0 0
    %225 = vmatpush1.bf16.msra.mxu0 0
    %226 = vmatprep.subr.bf16.mxu0 %v195
    %227 = vmatpush1.bf16.msra.mxu0 %v194
    %228 = vmatprep.subr.bf16.mxu0 %v191
    %229 = vmatpush1.bf16.msra.mxu0 %v190
    %230 = vmatprep.subr.bf16.mxu0 %v187
    %231 = vmatpush1.bf16.msra.mxu0 %v186
    %232 = vmatprep.subr.bf16.mxu0 %v183
    %233 = vmatpush1.bf16.msra.mxu0 %v182
    %234 = vmatprep.subr.bf16.mxu0 0
    %235 = vmatpush2.bf16.msra.mxu0 0
    %236 = vmatprep.subr.bf16.mxu0 0
    %237 = vmatpush2.bf16.msra.mxu0 0
    %238 = vmatprep.subr.bf16.mxu0 0
    %239 = vmatpush2.bf16.msra.mxu0 0
    %240 = vmatprep.subr.bf16.mxu0 0
    %241 = vmatpush2.bf16.msra.mxu0 0
    %242 = vmatprep.subr.bf16.mxu0 0
    %243 = vmatpush2.bf16.msra.mxu0 0
    %244 = vmatprep.subr.bf16.mxu0 0
    %245 = vmatpush2.bf16.msra.mxu0 0
    %246 = vmatprep.subr.bf16.mxu0 0
    %247 = vmatpush2.bf16.msra.mxu0 0
    %248 = vmatprep.subr.bf16.mxu0 0
    %249 = vmatpush2.bf16.msra.mxu0 0
    %250 = vmatprep.mubr.bf16.mxu0 0
    %251 = vmatmul.mubr.bf16.gmra.mxu0 %v216
    %v252 = vpop.f32.mrf.mxu0
    %v253 = vadd.f32 %v112, %v252
    %v254 = vpop.f32.mrf.mxu0
    %v255 = vadd.f32 %v116, %v254
    %v256 = vpop.f32.mrf.mxu0
    %v257 = vadd.f32 %v112, %v256
    %v258 = vpop.f32.mrf.mxu0
    %v259 = vadd.f32 %v116, %v258
    %260 = vdwg.mxu0
    %261 = vmatprep.subr.bf16.mxu0 0
    %262 = vmatpush1.bf16.msra.mxu0 0
    %263 = vmatprep.subr.bf16.mxu0 0
    %264 = vmatpush1.bf16.msra.mxu0 0
    %265 = vmatprep.subr.bf16.mxu0 0
    %266 = vmatpush1.bf16.msra.mxu0 0
    %267 = vmatprep.subr.bf16.mxu0 0
    %268 = vmatpush1.bf16.msra.mxu0 0
    %269 = vmatprep.subr.bf16.mxu0 %v197
    %270 = vmatpush1.bf16.msra.mxu0 %v196
    %271 = vmatprep.subr.bf16.mxu0 %v193
    %272 = vmatpush1.bf16.msra.mxu0 %v192
    %273 = vmatprep.subr.bf16.mxu0 %v189
    %274 = vmatpush1.bf16.msra.mxu0 %v188
    %275 = vmatprep.subr.bf16.mxu0 %v185
    %276 = vmatpush1.bf16.msra.mxu0 %v184
    %277 = vmatprep.subr.bf16.mxu0 0
    %278 = vmatpush2.bf16.msra.mxu0 0
    %279 = vmatprep.subr.bf16.mxu0 0
    %280 = vmatpush2.bf16.msra.mxu0 0
    %281 = vmatprep.subr.bf16.mxu0 0
    %282 = vmatpush2.bf16.msra.mxu0 0
    %283 = vmatprep.subr.bf16.mxu0 0
    %284 = vmatpush2.bf16.msra.mxu0 0
    %285 = vmatprep.subr.bf16.mxu0 0
    %286 = vmatpush2.bf16.msra.mxu0 0
    %287 = vmatprep.subr.bf16.mxu0 0
    %288 = vmatpush2.bf16.msra.mxu0 0
    %289 = vmatprep.subr.bf16.mxu0 0
    %290 = vmatpush2.bf16.msra.mxu0 0
    %291 = vmatprep.subr.bf16.mxu0 0
    %292 = vmatpush2.bf16.msra.mxu0 0
    %293 = vmatprep.mubr.bf16.mxu0 0
    %294 = vmatmul.mubr.bf16.gmra.mxu0 %v216
    %v295 = vpop.f32.mrf.mxu0
    %v296 = vadd.f32 %v120, %v295
    %v297 = vpop.f32.mrf.mxu0
    %v298 = vadd.f32 %v124, %v297
    %v299 = vpop.f32.mrf.mxu0
    %v300 = vadd.f32 %v120, %v299
    %v301 = vpop.f32.mrf.mxu0
    %v302 = vadd.f32 %v124, %v301
    %303 = vdwg.mxu0
    %v304 = vmul.f32 %v253, 0.01
    %v305 = vmul.f32 %v255, 0.01
    %v306 = vmul.f32 %v296, 0.01
    %v307 = vmul.f32 %v298, 0.01
    %v308 = vmul.f32 %v257, 0.01
    %v309 = vmul.f32 %v259, 0.01
    %v310 = vmul.f32 %v300, 0.01
    %v311 = vmul.f32 %v302, 0.01
    %v312 = vmax.f32 %v253, %v304
    %v313 = vmax.f32 %v255, %v305
    %v314 = vmax.f32 %v296, %v306
    %v315 = vmax.f32 %v298, %v307
    %v316 = vmax.f32 %v257, %v308
    %v317 = vmax.f32 %v259, %v309
    %v318 = vmax.f32 %v300, %v310
    %v319 = vmax.f32 %v302, %v311
    %v320 = vpack.c.bf16 %v316, %v312
    %v321 = vpack.c.bf16 %v317, %v313
    %v322 = vpack.c.bf16 %v318, %v314
    %v323 = vpack.c.bf16 %v319, %v315
    %v324 = vld [vmem:[#allocation5] sm:$0xff]
    %v325 = vld [vmem:[#allocation5 + $0x8] sm:$0xff]
    %v326 = vld [vmem:[#allocation5 + $0x10] sm:$0xff]
    %v327 = vld [vmem:[#allocation5 + $0x18] sm:$0xff]
    %v328 = vld [vmem:[#allocation5 + $0x20] sm:$0xff]
    %v329 = vld [vmem:[#allocation5 + $0x28] sm:$0xff]
    %v330 = vld [vmem:[#allocation5 + $0x30] sm:$0xff]
    %v331 = vld [vmem:[#allocation5 + $0x38] sm:$0xff]
    %v332 = vld [vmem:[#allocation5 + $0x40] sm:$0xff]
    %v333 = vld [vmem:[#allocation5 + $0x48] sm:$0xff]
    %v334 = vld [vmem:[#allocation5 + $0x50] sm:$0xff]
    %v335 = vld [vmem:[#allocation5 + $0x58] sm:$0xff]
    %v336 = vld [vmem:[#allocation5 + $0x60] sm:$0xff]
    %v337 = vld [vmem:[#allocation5 + $0x68] sm:$0xff]
    %v338 = vld [vmem:[#allocation5 + $0x70] sm:$0xff]
    %v339 = vld [vmem:[#allocation5 + $0x78] sm:$0xff]
    %v340 = vld [vmem:[#allocation5 + $0x80] sm:$0xff]
    %v341 = vld [vmem:[#allocation5 + $0x88] sm:$0xff]
    %v342 = vld [vmem:[#allocation5 + $0x90] sm:$0xff]
    %v343 = vld [vmem:[#allocation5 + $0x98] sm:$0xff]
    %v344 = vld [vmem:[#allocation5 + $0xa0] sm:$0xff]
    %v345 = vld [vmem:[#allocation5 + $0xa8] sm:$0xff]
    %v346 = vld [vmem:[#allocation5 + $0xb0] sm:$0xff]
    %v347 = vld [vmem:[#allocation5 + $0xb8] sm:$0xff]
    %v348 = vld [vmem:[#allocation5 + $0xc0] sm:$0xff]
    %v349 = vld [vmem:[#allocation5 + $0xc8] sm:$0xff]
    %v350 = vld [vmem:[#allocation5 + $0xd0] sm:$0xff]
    %v351 = vld [vmem:[#allocation5 + $0xd8] sm:$0xff]
    %v352 = vld [vmem:[#allocation5 + $0xe0] sm:$0xff]
    %v353 = vld [vmem:[#allocation5 + $0xe8] sm:$0xff]
    %v354 = vld [vmem:[#allocation5 + $0xf0] sm:$0xff]
    %v355 = vld [vmem:[#allocation5 + $0xf8] sm:$0xff]
    %v356 = vld [vmem:[#allocation5 + $0x100] sm:$0xff]
    %v357 = vld [vmem:[#allocation5 + $0x108] sm:$0xff]
    %v358 = vld [vmem:[#allocation5 + $0x110] sm:$0xff]
    %v359 = vld [vmem:[#allocation5 + $0x118] sm:$0xff]
    %v360 = vld [vmem:[#allocation5 + $0x120] sm:$0xff]
    %v361 = vld [vmem:[#allocation5 + $0x128] sm:$0xff]
    %v362 = vld [vmem:[#allocation5 + $0x130] sm:$0xff]
    %v363 = vld [vmem:[#allocation5 + $0x138] sm:$0xff]
    %v364 = vld [vmem:[#allocation5 + $0x140] sm:$0xff]
    %v365 = vld [vmem:[#allocation5 + $0x148] sm:$0xff]
    %v366 = vld [vmem:[#allocation5 + $0x150] sm:$0xff]
    %v367 = vld [vmem:[#allocation5 + $0x158] sm:$0xff]
    %v368 = vld [vmem:[#allocation5 + $0x160] sm:$0xff]
    %v369 = vld [vmem:[#allocation5 + $0x168] sm:$0xff]
    %v370 = vld [vmem:[#allocation5 + $0x170] sm:$0xff]
    %v371 = vld [vmem:[#allocation5 + $0x178] sm:$0xff]
    %v372 = vld [vmem:[#allocation5 + $0x180] sm:$0xff]
    %v373 = vld [vmem:[#allocation5 + $0x188] sm:$0xff]
    %v374 = vld [vmem:[#allocation5 + $0x190] sm:$0xff]
    %v375 = vld [vmem:[#allocation5 + $0x198] sm:$0xff]
    %v376 = vld [vmem:[#allocation5 + $0x1a0] sm:$0xff]
    %v377 = vld [vmem:[#allocation5 + $0x1a8] sm:$0xff]
    %v378 = vld [vmem:[#allocation5 + $0x1b0] sm:$0xff]
    %v379 = vld [vmem:[#allocation5 + $0x1b8] sm:$0xff]
    %v380 = vld [vmem:[#allocation5 + $0x1c0] sm:$0xff]
    %v381 = vld [vmem:[#allocation5 + $0x1c8] sm:$0xff]
    %v382 = vld [vmem:[#allocation5 + $0x1d0] sm:$0xff]
    %v383 = vld [vmem:[#allocation5 + $0x1d8] sm:$0xff]
    %v384 = vld [vmem:[#allocation5 + $0x1e0] sm:$0xff]
    %v385 = vld [vmem:[#allocation5 + $0x1e8] sm:$0xff]
    %v386 = vld [vmem:[#allocation5 + $0x1f0] sm:$0xff]
    %v387 = vld [vmem:[#allocation5 + $0x1f8] sm:$0xff]
    %v388 = vld [vmem:[%s4] sm:$0x3]
    %v390 = vlaneseq
    %v391 = vshrl.u32 %v390, 7
    %v392 = vsub.s32 0, %v391
    %v393 = vrot.slane %v388, %v392
    %v394 = vlaneseq
    %v395 = vshrl.u32 %v394, 7
    %v396 = vsub.s32 1, %v395
    %v397 = vrot.slane %v388, %v396
    %v464 = vunpack.c.l.b16 %v324
    %v465 = vunpack.c.h.b16 %v324
    %v466 = vunpack.c.l.b16 %v325
    %v467 = vunpack.c.h.b16 %v325
    %v468 = vunpack.c.l.b16 %v326
    %v469 = vunpack.c.h.b16 %v326
    %v470 = vunpack.c.l.b16 %v327
    %v471 = vunpack.c.h.b16 %v327
    %v472 = vunpack.c.l.b16 %v328
    %v473 = vunpack.c.h.b16 %v328
    %v474 = vunpack.c.l.b16 %v329
    %v475 = vunpack.c.h.b16 %v329
    %v476 = vunpack.c.l.b16 %v330
    %v477 = vunpack.c.h.b16 %v330
    %v478 = vunpack.c.l.b16 %v331
    %v479 = vunpack.c.h.b16 %v331
    %v480 = vunpack.c.l.b16 %v332
    %v481 = vunpack.c.h.b16 %v332
    %v482 = vunpack.c.l.b16 %v333
    %v483 = vunpack.c.h.b16 %v333
    %v484 = vunpack.c.l.b16 %v334
    %v485 = vunpack.c.h.b16 %v334
    %v486 = vunpack.c.l.b16 %v335
    %v487 = vunpack.c.h.b16 %v335
    %v488 = vunpack.c.l.b16 %v336
    %v489 = vunpack.c.h.b16 %v336
    %v490 = vunpack.c.l.b16 %v337
    %v491 = vunpack.c.h.b16 %v337
    %v492 = vunpack.c.l.b16 %v338
    %v493 = vunpack.c.h.b16 %v338
    %v494 = vunpack.c.l.b16 %v339
    %v495 = vunpack.c.h.b16 %v339
    %v496 = vunpack.c.l.b16 %v340
    %v497 = vunpack.c.h.b16 %v340
    %v498 = vunpack.c.l.b16 %v341
    %v499 = vunpack.c.h.b16 %v341
    %v500 = vunpack.c.l.b16 %v342
    %v501 = vunpack.c.h.b16 %v342
    %v502 = vunpack.c.l.b16 %v343
    %v503 = vunpack.c.h.b16 %v343
    %v504 = vunpack.c.l.b16 %v344
    %v505 = vunpack.c.h.b16 %v344
    %v506 = vunpack.c.l.b16 %v345
    %v507 = vunpack.c.h.b16 %v345
    %v508 = vunpack.c.l.b16 %v346
    %v509 = vunpack.c.h.b16 %v346
    %v510 = vunpack.c.l.b16 %v347
    %v511 = vunpack.c.h.b16 %v347
    %v512 = vunpack.c.l.b16 %v348
    %v513 = vunpack.c.h.b16 %v348
    %v514 = vunpack.c.l.b16 %v349
    %v515 = vunpack.c.h.b16 %v349
    %v516 = vunpack.c.l.b16 %v350
    %v517 = vunpack.c.h.b16 %v350
    %v518 = vunpack.c.l.b16 %v351
    %v519 = vunpack.c.h.b16 %v351
    %v520 = vunpack.c.l.b16 %v352
    %v521 = vunpack.c.h.b16 %v352
    %v522 = vunpack.c.l.b16 %v353
    %v523 = vunpack.c.h.b16 %v353
    %v524 = vunpack.c.l.b16 %v354
    %v525 = vunpack.c.h.b16 %v354
    %v526 = vunpack.c.l.b16 %v355
    %v527 = vunpack.c.h.b16 %v355
    %v528 = vunpack.c.l.b16 %v356
    %v529 = vunpack.c.h.b16 %v356
    %v530 = vunpack.c.l.b16 %v357
    %v531 = vunpack.c.h.b16 %v357
    %v532 = vunpack.c.l.b16 %v358
    %v533 = vunpack.c.h.b16 %v358
    %v534 = vunpack.c.l.b16 %v359
    %v535 = vunpack.c.h.b16 %v359
    %v536 = vunpack.c.l.b16 %v360
    %v537 = vunpack.c.h.b16 %v360
    %v538 = vunpack.c.l.b16 %v361
    %v539 = vunpack.c.h.b16 %v361
    %v540 = vunpack.c.l.b16 %v362
    %v541 = vunpack.c.h.b16 %v362
    %v542 = vunpack.c.l.b16 %v363
    %v543 = vunpack.c.h.b16 %v363
    %v544 = vunpack.c.l.b16 %v364
    %v545 = vunpack.c.h.b16 %v364
    %v546 = vunpack.c.l.b16 %v365
    %v547 = vunpack.c.h.b16 %v365
    %v548 = vunpack.c.l.b16 %v366
    %v549 = vunpack.c.h.b16 %v366
    %v550 = vunpack.c.l.b16 %v367
    %v551 = vunpack.c.h.b16 %v367
    %v552 = vunpack.c.l.b16 %v368
    %v553 = vunpack.c.h.b16 %v368
    %v554 = vunpack.c.l.b16 %v369
    %v555 = vunpack.c.h.b16 %v369
    %v556 = vunpack.c.l.b16 %v370
    %v557 = vunpack.c.h.b16 %v370
    %v558 = vunpack.c.l.b16 %v371
    %v559 = vunpack.c.h.b16 %v371
    %v560 = vunpack.c.l.b16 %v372
    %v561 = vunpack.c.h.b16 %v372
    %v562 = vunpack.c.l.b16 %v373
    %v563 = vunpack.c.h.b16 %v373
    %v564 = vunpack.c.l.b16 %v374
    %v565 = vunpack.c.h.b16 %v374
    %v566 = vunpack.c.l.b16 %v375
    %v567 = vunpack.c.h.b16 %v375
    %v568 = vunpack.c.l.b16 %v376
    %v569 = vunpack.c.h.b16 %v376
    %v570 = vunpack.c.l.b16 %v377
    %v571 = vunpack.c.h.b16 %v377
    %v572 = vunpack.c.l.b16 %v378
    %v573 = vunpack.c.h.b16 %v378
    %v574 = vunpack.c.l.b16 %v379
    %v575 = vunpack.c.h.b16 %v379
    %v576 = vunpack.c.l.b16 %v380
    %v577 = vunpack.c.h.b16 %v380
    %v578 = vunpack.c.l.b16 %v381
    %v579 = vunpack.c.h.b16 %v381
    %v580 = vunpack.c.l.b16 %v382
    %v581 = vunpack.c.h.b16 %v382
    %v582 = vunpack.c.l.b16 %v383
    %v583 = vunpack.c.h.b16 %v383
    %v584 = vunpack.c.l.b16 %v384
    %v585 = vunpack.c.h.b16 %v384
    %v586 = vunpack.c.l.b16 %v385
    %v587 = vunpack.c.h.b16 %v385
    %v588 = vunpack.c.l.b16 %v386
    %v589 = vunpack.c.h.b16 %v386
    %v590 = vunpack.c.l.b16 %v387
    %v591 = vunpack.c.h.b16 %v387
    %v592 = vpack.c.b16 %v466, %v464
    %v593 = vpack.c.b16 %v467, %v465
    %v594 = vpack.c.b16 %v470, %v468
    %v595 = vpack.c.b16 %v471, %v469
    %v596 = vpack.c.b16 %v474, %v472
    %v597 = vpack.c.b16 %v475, %v473
    %v598 = vpack.c.b16 %v478, %v476
    %v599 = vpack.c.b16 %v479, %v477
    %v600 = vpack.c.b16 %v482, %v480
    %v601 = vpack.c.b16 %v483, %v481
    %v602 = vpack.c.b16 %v486, %v484
    %v603 = vpack.c.b16 %v487, %v485
    %v604 = vpack.c.b16 %v490, %v488
    %v605 = vpack.c.b16 %v491, %v489
    %v606 = vpack.c.b16 %v494, %v492
    %v607 = vpack.c.b16 %v495, %v493
    %v608 = vpack.c.b16 %v498, %v496
    %v609 = vpack.c.b16 %v499, %v497
    %v610 = vpack.c.b16 %v502, %v500
    %v611 = vpack.c.b16 %v503, %v501
    %v612 = vpack.c.b16 %v506, %v504
    %v613 = vpack.c.b16 %v507, %v505
    %v614 = vpack.c.b16 %v510, %v508
    %v615 = vpack.c.b16 %v511, %v509
    %v616 = vpack.c.b16 %v514, %v512
    %v617 = vpack.c.b16 %v515, %v513
    %v618 = vpack.c.b16 %v518, %v516
    %v619 = vpack.c.b16 %v519, %v517
    %v620 = vpack.c.b16 %v522, %v520
    %v621 = vpack.c.b16 %v523, %v521
    %v622 = vpack.c.b16 %v526, %v524
    %v623 = vpack.c.b16 %v527, %v525
    %v624 = vpack.c.b16 %v530, %v528
    %v625 = vpack.c.b16 %v531, %v529
    %v626 = vpack.c.b16 %v534, %v532
    %v627 = vpack.c.b16 %v535, %v533
    %v628 = vpack.c.b16 %v538, %v536
    %v629 = vpack.c.b16 %v539, %v537
    %v630 = vpack.c.b16 %v542, %v540
    %v631 = vpack.c.b16 %v543, %v541
    %v632 = vpack.c.b16 %v546, %v544
    %v633 = vpack.c.b16 %v547, %v545
    %v634 = vpack.c.b16 %v550, %v548
    %v635 = vpack.c.b16 %v551, %v549
    %v636 = vpack.c.b16 %v554, %v552
    %v637 = vpack.c.b16 %v555, %v553
    %v638 = vpack.c.b16 %v558, %v556
    %v639 = vpack.c.b16 %v559, %v557
    %v640 = vpack.c.b16 %v562, %v560
    %v641 = vpack.c.b16 %v563, %v561
    %v642 = vpack.c.b16 %v566, %v564
    %v643 = vpack.c.b16 %v567, %v565
    %v644 = vpack.c.b16 %v570, %v568
    %v645 = vpack.c.b16 %v571, %v569
    %v646 = vpack.c.b16 %v574, %v572
    %v647 = vpack.c.b16 %v575, %v573
    %v648 = vpack.c.b16 %v578, %v576
    %v649 = vpack.c.b16 %v579, %v577
    %v650 = vpack.c.b16 %v582, %v580
    %v651 = vpack.c.b16 %v583, %v581
    %v652 = vpack.c.b16 %v586, %v584
    %v653 = vpack.c.b16 %v587, %v585
    %v654 = vpack.c.b16 %v590, %v588
    %v655 = vpack.c.b16 %v591, %v589
    %720 = vmatprep.subr.bf16.mxu0 %v607
    %721 = vmatpush1.bf16.msra.mxu0 %v606
    %722 = vmatprep.subr.bf16.mxu0 %v605
    %723 = vmatpush1.bf16.msra.mxu0 %v604
    %724 = vmatprep.subr.bf16.mxu0 %v603
    %725 = vmatpush1.bf16.msra.mxu0 %v602
    %726 = vmatprep.subr.bf16.mxu0 %v601
    %727 = vmatpush1.bf16.msra.mxu0 %v600
    %728 = vmatprep.subr.bf16.mxu0 %v599
    %729 = vmatpush1.bf16.msra.mxu0 %v598
    %730 = vmatprep.subr.bf16.mxu0 %v597
    %731 = vmatpush1.bf16.msra.mxu0 %v596
    %732 = vmatprep.subr.bf16.mxu0 %v595
    %733 = vmatpush1.bf16.msra.mxu0 %v594
    %734 = vmatprep.subr.bf16.mxu0 %v593
    %735 = vmatpush1.bf16.msra.mxu0 %v592
    %736 = vmatprep.subr.bf16.mxu0 %v623
    %737 = vmatpush2.bf16.msra.mxu0 %v622
    %738 = vmatprep.subr.bf16.mxu0 %v621
    %739 = vmatpush2.bf16.msra.mxu0 %v620
    %740 = vmatprep.subr.bf16.mxu0 %v619
    %741 = vmatpush2.bf16.msra.mxu0 %v618
    %742 = vmatprep.subr.bf16.mxu0 %v617
    %743 = vmatpush2.bf16.msra.mxu0 %v616
    %744 = vmatprep.subr.bf16.mxu0 %v615
    %745 = vmatpush2.bf16.msra.mxu0 %v614
    %746 = vmatprep.subr.bf16.mxu0 %v613
    %747 = vmatpush2.bf16.msra.mxu0 %v612
    %748 = vmatprep.subr.bf16.mxu0 %v611
    %749 = vmatpush2.bf16.msra.mxu0 %v610
    %750 = vmatprep.subr.bf16.mxu0 %v609
    %751 = vmatpush2.bf16.msra.mxu0 %v608
    %752 = vmatprep.mubr.bf16.mxu0 %v321
    %753 = vmatmul.mubr.bf16.gmra.mxu0 %v320
    %v754 = vpop.f32.mrf.mxu0
    %v755 = vadd.f32 %v393, %v754
    %v756 = vpop.f32.mrf.mxu0
    %v757 = vadd.f32 %v397, %v756
    %v758 = vpop.f32.mrf.mxu0
    %v759 = vadd.f32 %v393, %v758
    %v760 = vpop.f32.mrf.mxu0
    %v761 = vadd.f32 %v397, %v760
    %762 = vdwg.mxu0
    %763 = vmatprep.subr.bf16.mxu0 %v639
    %764 = vmatpush1.bf16.msra.mxu0 %v638
    %765 = vmatprep.subr.bf16.mxu0 %v637
    %766 = vmatpush1.bf16.msra.mxu0 %v636
    %767 = vmatprep.subr.bf16.mxu0 %v635
    %768 = vmatpush1.bf16.msra.mxu0 %v634
    %769 = vmatprep.subr.bf16.mxu0 %v633
    %770 = vmatpush1.bf16.msra.mxu0 %v632
    %771 = vmatprep.subr.bf16.mxu0 %v631
    %772 = vmatpush1.bf16.msra.mxu0 %v630
    %773 = vmatprep.subr.bf16.mxu0 %v629
    %774 = vmatpush1.bf16.msra.mxu0 %v628
    %775 = vmatprep.subr.bf16.mxu0 %v627
    %776 = vmatpush1.bf16.msra.mxu0 %v626
    %777 = vmatprep.subr.bf16.mxu0 %v625
    %778 = vmatpush1.bf16.msra.mxu0 %v624
    %779 = vmatprep.subr.bf16.mxu0 %v655
    %780 = vmatpush2.bf16.msra.mxu0 %v654
    %781 = vmatprep.subr.bf16.mxu0 %v653
    %782 = vmatpush2.bf16.msra.mxu0 %v652
    %783 = vmatprep.subr.bf16.mxu0 %v651
    %784 = vmatpush2.bf16.msra.mxu0 %v650
    %785 = vmatprep.subr.bf16.mxu0 %v649
    %786 = vmatpush2.bf16.msra.mxu0 %v648
    %787 = vmatprep.subr.bf16.mxu0 %v647
    %788 = vmatpush2.bf16.msra.mxu0 %v646
    %789 = vmatprep.subr.bf16.mxu0 %v645
    %790 = vmatpush2.bf16.msra.mxu0 %v644
    %791 = vmatprep.subr.bf16.mxu0 %v643
    %792 = vmatpush2.bf16.msra.mxu0 %v642
    %793 = vmatprep.subr.bf16.mxu0 %v641
    %794 = vmatpush2.bf16.msra.mxu0 %v640
    %795 = vmatprep.mubr.bf16.mxu0 %v323
    %796 = vmatmul.mubr.bf16.gmra.mxu0 %v322
    %v797 = vpop.f32.mrf.mxu0
    %v798 = vadd.f32 %v755, %v797
    %v799 = vpop.f32.mrf.mxu0
    %v800 = vadd.f32 %v757, %v799
    %v801 = vpop.f32.mrf.mxu0
    %v802 = vadd.f32 %v759, %v801
    %v803 = vpop.f32.mrf.mxu0
    %v804 = vadd.f32 %v761, %v803
    %805 = vdwg.mxu0
    %v806 = vmul.f32 %v798, 0.01
    %v807 = vmul.f32 %v800, 0.01
    %v808 = vmul.f32 %v802, 0.01
    %v809 = vmul.f32 %v804, 0.01
    %v810 = vmax.f32 %v798, %v806
    %v811 = vmax.f32 %v800, %v807
    %v812 = vmax.f32 %v802, %v808
    %v813 = vmax.f32 %v804, %v809
    %v814 = vpack.c.bf16 %v812, %v810
    %v815 = vpack.c.bf16 %v813, %v811
    %v816 = vld [vmem:[#allocation7] sm:$0xf]
    %v817 = vld [vmem:[#allocation7 + $0x4] sm:$0xf]
    %v818 = vld [vmem:[#allocation7 + $0x8] sm:$0xf]
    %v819 = vld [vmem:[#allocation7 + $0xc] sm:$0xf]
    %v820 = vld [vmem:[#allocation7 + $0x10] sm:$0xf]
    %v821 = vld [vmem:[#allocation7 + $0x14] sm:$0xf]
    %v822 = vld [vmem:[#allocation7 + $0x18] sm:$0xf]
    %v823 = vld [vmem:[#allocation7 + $0x1c] sm:$0xf]
    %v824 = vld [vmem:[#allocation7 + $0x20] sm:$0xf]
    %v825 = vld [vmem:[#allocation7 + $0x24] sm:$0xf]
    %v826 = vld [vmem:[#allocation7 + $0x28] sm:$0xf]
    %v827 = vld [vmem:[#allocation7 + $0x2c] sm:$0xf]
    %v828 = vld [vmem:[#allocation7 + $0x30] sm:$0xf]
    %v829 = vld [vmem:[#allocation7 + $0x34] sm:$0xf]
    %v830 = vld [vmem:[#allocation7 + $0x38] sm:$0xf]
    %v831 = vld [vmem:[#allocation7 + $0x3c] sm:$0xf]
    %v832 = vld [vmem:[#allocation7 + $0x40] sm:$0xf]
    %v833 = vld [vmem:[#allocation7 + $0x44] sm:$0xf]
    %v834 = vld [vmem:[#allocation7 + $0x48] sm:$0xf]
    %v835 = vld [vmem:[#allocation7 + $0x4c] sm:$0xf]
    %v836 = vld [vmem:[#allocation7 + $0x50] sm:$0xf]
    %v837 = vld [vmem:[#allocation7 + $0x54] sm:$0xf]
    %v838 = vld [vmem:[#allocation7 + $0x58] sm:$0xf]
    %v839 = vld [vmem:[#allocation7 + $0x5c] sm:$0xf]
    %v840 = vld [vmem:[#allocation7 + $0x60] sm:$0xf]
    %v841 = vld [vmem:[#allocation7 + $0x64] sm:$0xf]
    %v842 = vld [vmem:[#allocation7 + $0x68] sm:$0xf]
    %v843 = vld [vmem:[#allocation7 + $0x6c] sm:$0xf]
    %v844 = vld [vmem:[#allocation7 + $0x70] sm:$0xf]
    %v845 = vld [vmem:[#allocation7 + $0x74] sm:$0xf]
    %v846 = vld [vmem:[#allocation7 + $0x78] sm:$0xf]
    %v847 = vld [vmem:[#allocation7 + $0x7c] sm:$0xf]
    %v848 = vld [vmem:[%s6] sm:$0x1]
    %v850 = vlaneseq
    %v851 = vshrl.u32 %v850, 7
    %v852 = vsub.s32 0, %v851
    %v853 = vrot.slane %v848, %v852
    %v887 = vunpack.c.l.b16 %v816
    %v888 = vunpack.c.l.b16 %v817
    %v889 = vunpack.c.l.b16 %v818
    %v890 = vunpack.c.l.b16 %v819
    %v891 = vunpack.c.l.b16 %v820
    %v892 = vunpack.c.l.b16 %v821
    %v893 = vunpack.c.l.b16 %v822
    %v894 = vunpack.c.l.b16 %v823
    %v895 = vunpack.c.l.b16 %v824
    %v896 = vunpack.c.l.b16 %v825
    %v897 = vunpack.c.l.b16 %v826
    %v898 = vunpack.c.l.b16 %v827
    %v899 = vunpack.c.l.b16 %v828
    %v900 = vunpack.c.l.b16 %v829
    %v901 = vunpack.c.l.b16 %v830
    %v902 = vunpack.c.l.b16 %v831
    %v903 = vunpack.c.l.b16 %v832
    %v904 = vunpack.c.l.b16 %v833
    %v905 = vunpack.c.l.b16 %v834
    %v906 = vunpack.c.l.b16 %v835
    %v907 = vunpack.c.l.b16 %v836
    %v908 = vunpack.c.l.b16 %v837
    %v909 = vunpack.c.l.b16 %v838
    %v910 = vunpack.c.l.b16 %v839
    %v911 = vunpack.c.l.b16 %v840
    %v912 = vunpack.c.l.b16 %v841
    %v913 = vunpack.c.l.b16 %v842
    %v914 = vunpack.c.l.b16 %v843
    %v915 = vunpack.c.l.b16 %v844
    %v916 = vunpack.c.l.b16 %v845
    %v917 = vunpack.c.l.b16 %v846
    %v918 = vunpack.c.l.b16 %v847
    %v919 = vpack.c.b16 %v888, %v887
    %v920 = vpack.c.b16 %v890, %v889
    %v921 = vpack.c.b16 %v892, %v891
    %v922 = vpack.c.b16 %v894, %v893
    %v923 = vpack.c.b16 %v896, %v895
    %v924 = vpack.c.b16 %v898, %v897
    %v925 = vpack.c.b16 %v900, %v899
    %v926 = vpack.c.b16 %v902, %v901
    %v927 = vpack.c.b16 %v904, %v903
    %v928 = vpack.c.b16 %v906, %v905
    %v929 = vpack.c.b16 %v908, %v907
    %v930 = vpack.c.b16 %v910, %v909
    %v931 = vpack.c.b16 %v912, %v911
    %v932 = vpack.c.b16 %v914, %v913
    %v933 = vpack.c.b16 %v916, %v915
    %v934 = vpack.c.b16 %v918, %v917
    %951 = vmatprep.subr.bf16.mxu0 0
    %952 = vmatpush1.bf16.msra.mxu0 %v926
    %953 = vmatprep.subr.bf16.mxu0 0
    %954 = vmatpush1.bf16.msra.mxu0 %v925
    %955 = vmatprep.subr.bf16.mxu0 0
    %956 = vmatpush1.bf16.msra.mxu0 %v924
    %957 = vmatprep.subr.bf16.mxu0 0
    %958 = vmatpush1.bf16.msra.mxu0 %v923
    %959 = vmatprep.subr.bf16.mxu0 0
    %960 = vmatpush1.bf16.msra.mxu0 %v922
    %961 = vmatprep.subr.bf16.mxu0 0
    %962 = vmatpush1.bf16.msra.mxu0 %v921
    %963 = vmatprep.subr.bf16.mxu0 0
    %964 = vmatpush1.bf16.msra.mxu0 %v920
    %965 = vmatprep.subr.bf16.mxu0 0
    %966 = vmatpush1.bf16.msra.mxu0 %v919
    %967 = vmatprep.subr.bf16.mxu0 0
    %968 = vmatpush2.bf16.msra.mxu0 %v934
    %969 = vmatprep.subr.bf16.mxu0 0
    %970 = vmatpush2.bf16.msra.mxu0 %v933
    %971 = vmatprep.subr.bf16.mxu0 0
    %972 = vmatpush2.bf16.msra.mxu0 %v932
    %973 = vmatprep.subr.bf16.mxu0 0
    %974 = vmatpush2.bf16.msra.mxu0 %v931
    %975 = vmatprep.subr.bf16.mxu0 0
    %976 = vmatpush2.bf16.msra.mxu0 %v930
    %977 = vmatprep.subr.bf16.mxu0 0
    %978 = vmatpush2.bf16.msra.mxu0 %v929
    %979 = vmatprep.subr.bf16.mxu0 0
    %980 = vmatpush2.bf16.msra.mxu0 %v928
    %981 = vmatprep.subr.bf16.mxu0 0
    %982 = vmatpush2.bf16.msra.mxu0 %v927
    %983 = vmatprep.mubr.bf16.mxu0 %v815
    %984 = vmatmul.mubr.bf16.gmra.mxu0 %v814
    %v985 = vpop.f32.mrf.mxu0
    %v986 = vadd.f32 %v853, %v985
    %v987 = vpop.f32.mrf.mxu0
    %v988 = vpop.f32.mrf.mxu0
    %v989 = vadd.f32 %v853, %v988
    %v990 = vpop.f32.mrf.mxu0
    %991 = vdwg.mxu0
    %v992 = vmul.f32 %v986, 0.01
    %v993 = vmul.f32 %v989, 0.01
    %v994 = vmax.f32 %v986, %v992
    %v995 = vmax.f32 %v989, %v993
    %v996 = vpack.c.bf16 %v995, %v994
    %v997 = vld [vmem:[#allocation8] sm:$0xf]
    %v998 = vld [vmem:[#allocation8 + $0x4] sm:$0xf]
    %v999 = vld [vmem:[#allocation8 + $0x8] sm:$0xf]
    %v1000 = vld [vmem:[#allocation8 + $0xc] sm:$0xf]
    %v1001 = vld [vmem:[#allocation8 + $0x10] sm:$0xf]
    %v1002 = vld [vmem:[#allocation8 + $0x14] sm:$0xf]
    %v1003 = vld [vmem:[#allocation8 + $0x18] sm:$0xf]
    %v1004 = vld [vmem:[#allocation8 + $0x1c] sm:$0xf]
    %v1005 = vld [vmem:[#allocation8 + $0x20] sm:$0xf]
    %v1006 = vld [vmem:[#allocation8 + $0x24] sm:$0xf]
    %v1007 = vld [vmem:[#allocation8 + $0x28] sm:$0xf]
    %v1008 = vld [vmem:[#allocation8 + $0x2c] sm:$0xf]
    %v1009 = vld [vmem:[#allocation8 + $0x30] sm:$0xf]
    %v1010 = vld [vmem:[#allocation8 + $0x34] sm:$0xf]
    %v1011 = vld [vmem:[#allocation8 + $0x38] sm:$0xf]
    %v1012 = vld [vmem:[#allocation8 + $0x3c] sm:$0xf]
    %v1013 = vld [vmem:[%s8] sm:$0x1]
    %v1015 = vlaneseq
    %v1016 = vshrl.u32 %v1015, 7
    %v1017 = vsub.s32 0, %v1016
    %v1018 = vrot.slane %v1013, %v1017
    %v1036 = vunpack.c.l.b16 %v997
    %v1037 = vunpack.c.l.b16 %v998
    %v1038 = vunpack.c.l.b16 %v999
    %v1039 = vunpack.c.l.b16 %v1000
    %v1040 = vunpack.c.l.b16 %v1001
    %v1041 = vunpack.c.l.b16 %v1002
    %v1042 = vunpack.c.l.b16 %v1003
    %v1043 = vunpack.c.l.b16 %v1004
    %v1044 = vunpack.c.l.b16 %v1005
    %v1045 = vunpack.c.l.b16 %v1006
    %v1046 = vunpack.c.l.b16 %v1007
    %v1047 = vunpack.c.l.b16 %v1008
    %v1048 = vunpack.c.l.b16 %v1009
    %v1049 = vunpack.c.l.b16 %v1010
    %v1050 = vunpack.c.l.b16 %v1011
    %v1051 = vunpack.c.l.b16 %v1012
    %v1052 = vpack.c.b16 %v1037, %v1036
    %v1053 = vpack.c.b16 %v1039, %v1038
    %v1054 = vpack.c.b16 %v1041, %v1040
    %v1055 = vpack.c.b16 %v1043, %v1042
    %v1056 = vpack.c.b16 %v1045, %v1044
    %v1057 = vpack.c.b16 %v1047, %v1046
    %v1058 = vpack.c.b16 %v1049, %v1048
    %v1059 = vpack.c.b16 %v1051, %v1050
    %1068 = vmatprep.subr.bf16.mxu0 0
    %1069 = vmatpush1.bf16.msra.mxu0 %v1059
    %1070 = vmatprep.subr.bf16.mxu0 0
    %1071 = vmatpush1.bf16.msra.mxu0 %v1058
    %1072 = vmatprep.subr.bf16.mxu0 0
    %1073 = vmatpush1.bf16.msra.mxu0 %v1057
    %1074 = vmatprep.subr.bf16.mxu0 0
    %1075 = vmatpush1.bf16.msra.mxu0 %v1056
    %1076 = vmatprep.subr.bf16.mxu0 0
    %1077 = vmatpush1.bf16.msra.mxu0 %v1055
    %1078 = vmatprep.subr.bf16.mxu0 0
    %1079 = vmatpush1.bf16.msra.mxu0 %v1054
    %1080 = vmatprep.subr.bf16.mxu0 0
    %1081 = vmatpush1.bf16.msra.mxu0 %v1053
    %1082 = vmatprep.subr.bf16.mxu0 0
    %1083 = vmatpush1.bf16.msra.mxu0 %v1052
    %1084 = vmatprep.subr.bf16.mxu0 0
    %1085 = vmatpush2.bf16.msra.mxu0 0
    %1086 = vmatprep.subr.bf16.mxu0 0
    %1087 = vmatpush2.bf16.msra.mxu0 0
    %1088 = vmatprep.subr.bf16.mxu0 0
    %1089 = vmatpush2.bf16.msra.mxu0 0
    %1090 = vmatprep.subr.bf16.mxu0 0
    %1091 = vmatpush2.bf16.msra.mxu0 0
    %1092 = vmatprep.subr.bf16.mxu0 0
    %1093 = vmatpush2.bf16.msra.mxu0 0
    %1094 = vmatprep.subr.bf16.mxu0 0
    %1095 = vmatpush2.bf16.msra.mxu0 0
    %1096 = vmatprep.subr.bf16.mxu0 0
    %1097 = vmatpush2.bf16.msra.mxu0 0
    %1098 = vmatprep.subr.bf16.mxu0 0
    %1099 = vmatpush2.bf16.msra.mxu0 0
    %1100 = vmatprep.mubr.bf16.mxu0 0
    %1101 = vmatmul.mubr.bf16.gmra.mxu0 %v996
    %v1102 = vpop.f32.mrf.mxu0
    %v1103 = vadd.f32 %v1018, %v1102
    %v1104 = vpop.f32.mrf.mxu0
    %v1105 = vpop.f32.mrf.mxu0
    %v1106 = vadd.f32 %v1018, %v1105
    %v1107 = vpop.f32.mrf.mxu0
    %1108 = vdwg.mxu0
    %1109 = vst [vmem:[#allocation10] sm:$0xff] %v1103
    %1110 = vst [vmem:[#allocation10 + $0x8] sm:$0xff] %v1106
    // Predicated region
    $region54: #{mlp_forward.1} parent=1 // pred_check
      _
    $region55: #{mlp_forward.1} parent=1 // pred_check_branch
      %1112 = sbr.rel (0) target = $region57
    $region56: #{mlp_forward.1} parent=1 // pred_region
      %s1114 = ssub.s32 256, 256
      %1115 = vsyncadd [#allocation4], %s1114
      %s1116 = sshll.u32 [#allocation10], 4
      %s1117 = int_to_ptr.vmem [resolvable:$true] %s1116
      %1122 = dma.vmem_to_hbm [thread:$0]  %s1117, 256, %s9, [#allocation4], 128, 128, 8
    $region57: #{mlp_forward.1} parent=1 // pred_fallthru
      _
    // Predicated region
    $region58: #{mlp_forward.1} parent=1 // pred_check
      _
    $region59: #{mlp_forward.1} parent=1 // pred_check_branch
      %1124 = sbr.rel (0) target = $region61
    $region60: #{mlp_forward.1} parent=1 // pred_region
      %1125 = dma.done [#allocation4], 256
    $region61: #{mlp_forward.1} parent=1 // pred_fallthru
      _
    %1126 = vsyncpa [#allocation3], 1
    %1127 = vsyncpa [#allocation6], 1
    %1128 = vsyncpa [#allocation9], 1
    %1129 = vsyncpa [#allocation4], 1

</llo_original>
